<compile_context>
chip_gen: v5e
topology: v5e:2x2
jax: 0.10.0
libtpu: 0.0.40
codegen_flags: <defaults>
</compile_context>

<pallas_src>
import functools

import jax
import jax.numpy as jnp
from jax.experimental import pallas as pl
from jax.experimental.pallas import tpu as pltpu


def _round_up(x: int, m: int) -> int:
    return ((x + m - 1) // m) * m


def pgn_kernel(x_ref, w1_ref, b1_ref, w2_ref, b2_ref, o_ref):
    x = x_ref[...]                                   # (TB, K) f32
    TB, K = x.shape
    H = w1_ref.shape[1]
    N = o_ref.shape[1]                               # real n_actions (narrow output)

    # ---- Layer 1: Linear(K, H) + ReLU ----
    if K <= 16:
        # Tiny contraction: K broadcast multiply-adds on the VPU (outer-product
        # accumulation) — avoids MXU push/pop latency for a <1%-filled matmul.
        h = jnp.broadcast_to(b1_ref[...], (TB, H))   # start from the bias row
        for k in range(K):                           # static unroll
            h = h + x[:, k:k + 1] * w1_ref[k:k + 1, :]
    else:
        h = jnp.dot(x, w1_ref[...], preferred_element_type=jnp.float32) + b1_ref[...]
    h = jnp.maximum(h, 0.0)

    # ---- Layer 2: bf16 MXU matmul (w2 lane-padded to 128), f32 accumulation ----
    out = jnp.dot(h.astype(w2_ref.dtype), w2_ref[...],
                  preferred_element_type=jnp.float32)
    out = out + b2_ref[...]                          # (TB, N_pad) f32

    # Store only the real action columns; padded lanes never reach HBM.
    o_ref[...] = out[:, :N].astype(o_ref.dtype)


def prepare_params(w1, b1, w2, b2, *, lane=128):
    """One-time parameter prep (keep OUT of the per-call path):
    pad layer-2 weights/bias to a lane-dense width and cast w2 to bf16."""
    H, N = w2.shape
    n_pad = _round_up(max(N, lane), lane)
    w2p = jnp.zeros((H, n_pad), jnp.bfloat16).at[:, :N].set(w2.astype(jnp.bfloat16))
    b2p = jnp.zeros((1, n_pad), jnp.float32).at[:, :N].set(
        jnp.asarray(b2, jnp.float32).reshape(1, N))
    return (jnp.asarray(w1, jnp.float32),
            jnp.asarray(b1, jnp.float32).reshape(1, -1),
            w2p, b2p)


@functools.partial(jax.jit, static_argnames=("n_actions", "block_b"))
def pgn_forward(x, w1, b1, w2p, b2p, *, n_actions, block_b=4096):
    B, K = x.shape
    H = w1.shape[1]
    N = n_actions

    block_b = _round_up(block_b, 8)                  # keep block sublane-aligned
    if B <= 128:
        # Single tile; block dims that equal the full array dims are always legal.
        TB = B
    else:
        # Aim for >= 2 grid steps so "parallel" can shard over both v7x TensorCores;
        # large tiles amortize the ~0.35 us/step pipeline overhead on all gens.
        TB = min(block_b, _round_up(pl.cdiv(B, 2), 8))
    grid = (pl.cdiv(B, TB),)                         # ragged last tile handled by Pallas

    vmem = pltpu.MemorySpace.VMEM

    out = pl.pallas_call(
        pgn_kernel,
        out_shape=jax.ShapeDtypeStruct((B, N), jnp.float32),   # narrow HBM output
        grid=grid,
        in_specs=[
            # x: tiled over the batch grid (last tile may be ragged; padded rows
            # compute garbage that is never written back).
            pl.BlockSpec((TB, K), lambda i: (i, 0), memory_space=vmem),
            # weights/biases: constant index_map -> fetched once, resident in VMEM
            pl.BlockSpec((K, H), lambda i: (0, 0), memory_space=vmem),
            pl.BlockSpec((1, H), lambda i: (0, 0), memory_space=vmem),
            pl.BlockSpec(w2p.shape, lambda i: (0, 0), memory_space=vmem),
            pl.BlockSpec(b2p.shape, lambda i: (0, 0), memory_space=vmem),
        ],
        # Last block dim == full array dim (N), second-to-last is 8-aligned or == B.
        out_specs=pl.BlockSpec((TB, N), lambda i: (i, 0), memory_space=vmem),
        compiler_params=pltpu.CompilerParams(
            dimension_semantics=("parallel",),       # v7x: shard batch over both TCs
        ),
    )(x, w1, b1, w2p, b2p)

    return out


def init_params(key, input_size, n_actions, hidden=128):
    # Deterministic init mimicking PyTorch Linear default: U(-1/sqrt(fan_in), 1/sqrt(fan_in)).
    k1, k2, k3, k4 = jax.random.split(key, 4)
    bound1 = 1.0 / jnp.sqrt(jnp.float32(input_size))
    bound2 = 1.0 / jnp.sqrt(jnp.float32(hidden))
    w1 = jax.random.uniform(k1, (input_size, hidden), jnp.float32, -bound1, bound1)
    b1 = jax.random.uniform(k2, (1, hidden), jnp.float32, -bound1, bound1)
    w2 = jax.random.uniform(k3, (hidden, n_actions), jnp.float32, -bound2, bound2)
    b2 = jax.random.uniform(k4, (1, n_actions), jnp.float32, -bound2, bound2)
    return w1, b1, w2, b2


def _ref(x, w1, b1, w2, b2):
    return jnp.maximum(x @ w1 + b1, 0.0) @ w2 + b2


if __name__ == "__main__":
    key = jax.random.PRNGKey(0)
    input_size = 4   # CartPole observation dim
    n_actions = 2    # CartPole action dim

    k_x1, k_x2, k_p = jax.random.split(key, 3)
    w1, b1, w2, b2 = init_params(k_p, input_size, n_actions)
    params = prepare_params(w1, b1, w2, b2)          # one-time pad + bf16 cast

    # Case 1: small, non-sublane-aligned batch (single tile, TB == B).
    x_small = jax.random.normal(k_x1, (10, input_size), jnp.float32)
    out_small = jax.block_until_ready(
        pgn_forward(x_small, *params, n_actions=n_actions))
    ref_small = _ref(x_small, w1, b1, w2, b2)
    assert out_small.shape == (10, n_actions)
    # bf16 layer-2 operands -> loosened tolerance vs. the f32 reference.
    assert jnp.allclose(out_small, ref_small, atol=2e-2, rtol=2e-2), (
        float(jnp.max(jnp.abs(out_small - ref_small))))

    # Case 2: multi-step batch grid with a ragged last tile
    # (block_b=128 -> TB=128, grid=(3,), last tile covers rows 256..271 only).
    x_big = jax.random.normal(k_x2, (272, input_size), jnp.float32)
    out_big = jax.block_until_ready(
        pgn_forward(x_big, *params, n_actions=n_actions, block_b=128))
    ref_big = _ref(x_big, w1, b1, w2, b2)
    assert out_big.shape == (272, n_actions)
    assert jnp.allclose(out_big, ref_big, atol=2e-2, rtol=2e-2), (
        float(jnp.max(jnp.abs(out_big - ref_big))))

    print("KERNEL_OK")
</pallas_src>

<mosaic_0001>
module attributes {stable_mosaic.version = 11 : i64} {
  func.func @pgn_kernel(%arg0: i32, %arg1: memref<10x4xf32, #tpu.memory_space<vmem>>, %arg2: memref<4x128xf32, #tpu.memory_space<vmem>>, %arg3: memref<1x128xf32, #tpu.memory_space<vmem>>, %arg4: memref<128x128xbf16, #tpu.memory_space<vmem>>, %arg5: memref<1x128xf32, #tpu.memory_space<vmem>>, %arg6: memref<10x2xf32, #tpu.memory_space<vmem>>) attributes {dimension_semantics = [#tpu.dimension_semantics<parallel>], iteration_bounds = array<i64: 1>, scalar_prefetch = 0 : i64, scratch_operands = 0 : i64, tpu.core_type = #tpu.core_type<tc>, window_params = [{transform_indices = @transform_0, window_bounds = array<i64: 10, 4>}, {pipeline_mode = #tpu.pipeline_mode<synchronous>, transform_indices = @transform_1, window_bounds = array<i64: 4, 128>}, {pipeline_mode = #tpu.pipeline_mode<synchronous>, transform_indices = @transform_2, window_bounds = array<i64: 1, 128>}, {pipeline_mode = #tpu.pipeline_mode<synchronous>, transform_indices = @transform_3, window_bounds = array<i64: 128, 128>}, {pipeline_mode = #tpu.pipeline_mode<synchronous>, transform_indices = @transform_4, window_bounds = array<i64: 1, 128>}, {transform_indices = @transform_5, window_bounds = array<i64: 10, 2>}]} {
    %c0 = arith.constant 0 : index
    %c0_0 = arith.constant 0 : index
    %0 = vector.load %arg1[%c0, %c0_0] : memref<10x4xf32, #tpu.memory_space<vmem>>, vector<10x4xf32>
    %c0_1 = arith.constant 0 : index
    %c0_2 = arith.constant 0 : index
    %1 = vector.load %arg3[%c0_1, %c0_2] : memref<1x128xf32, #tpu.memory_space<vmem>>, vector<1x128xf32>
    %2 = vector.shape_cast %1 : vector<1x128xf32> to vector<1x128xf32>
    %3 = vector.broadcast %2 : vector<1x128xf32> to vector<10x128xf32>
    %4 = vector.extract_strided_slice %0 {offsets = [0, 0], sizes = [10, 1], strides = [1, 1]} : vector<10x4xf32> to vector<10x1xf32>
    %c0_3 = arith.constant 0 : index
    %c0_4 = arith.constant 0 : index
    %5 = vector.load %arg2[%c0_3, %c0_4] : memref<4x128xf32, #tpu.memory_space<vmem>>, vector<1x128xf32>
    %6 = vector.broadcast %4 : vector<10x1xf32> to vector<10x128xf32>
    %7 = vector.broadcast %5 : vector<1x128xf32> to vector<10x128xf32>
    %8 = arith.mulf %6, %7 : vector<10x128xf32>
    %9 = arith.addf %3, %8 : vector<10x128xf32>
    %10 = vector.extract_strided_slice %0 {offsets = [0, 1], sizes = [10, 1], strides = [1, 1]} : vector<10x4xf32> to vector<10x1xf32>
    %c1 = arith.constant 1 : index
    %c0_5 = arith.constant 0 : index
    %11 = vector.load %arg2[%c1, %c0_5] : memref<4x128xf32, #tpu.memory_space<vmem>>, vector<1x128xf32>
    %12 = vector.broadcast %10 : vector<10x1xf32> to vector<10x128xf32>
    %13 = vector.broadcast %11 : vector<1x128xf32> to vector<10x128xf32>
    %14 = arith.mulf %12, %13 : vector<10x128xf32>
    %15 = arith.addf %9, %14 : vector<10x128xf32>
    %16 = vector.extract_strided_slice %0 {offsets = [0, 2], sizes = [10, 1], strides = [1, 1]} : vector<10x4xf32> to vector<10x1xf32>
    %c2 = arith.constant 2 : index
    %c0_6 = arith.constant 0 : index
    %17 = vector.load %arg2[%c2, %c0_6] : memref<4x128xf32, #tpu.memory_space<vmem>>, vector<1x128xf32>
    %18 = vector.broadcast %16 : vector<10x1xf32> to vector<10x128xf32>
    %19 = vector.broadcast %17 : vector<1x128xf32> to vector<10x128xf32>
    %20 = arith.mulf %18, %19 : vector<10x128xf32>
    %21 = arith.addf %15, %20 : vector<10x128xf32>
    %22 = vector.extract_strided_slice %0 {offsets = [0, 3], sizes = [10, 1], strides = [1, 1]} : vector<10x4xf32> to vector<10x1xf32>
    %c3 = arith.constant 3 : index
    %c0_7 = arith.constant 0 : index
    %23 = vector.load %arg2[%c3, %c0_7] : memref<4x128xf32, #tpu.memory_space<vmem>>, vector<1x128xf32>
    %24 = vector.broadcast %22 : vector<10x1xf32> to vector<10x128xf32>
    %25 = vector.broadcast %23 : vector<1x128xf32> to vector<10x128xf32>
    %26 = arith.mulf %24, %25 : vector<10x128xf32>
    %27 = arith.addf %21, %26 : vector<10x128xf32>
    %cst = arith.constant 0.000000e+00 : f32
    %28 = vector.broadcast %cst : f32 to vector<10x128xf32>
    %29 = arith.maximumf %27, %28 : vector<10x128xf32>
    %30 = arith.truncf %29 : vector<10x128xf32> to vector<10x128xbf16>
    %c0_8 = arith.constant 0 : index
    %c0_9 = arith.constant 0 : index
    %31 = vector.load %arg4[%c0_8, %c0_9] : memref<128x128xbf16, #tpu.memory_space<vmem>>, vector<128x128xbf16>
    %cst_10 = arith.constant dense<0.000000e+00> : vector<10x128xf32>
    %32 = tpu.matmul %30, %31, %cst_10 {dimension_numbers = #tpu.dot_dimension_numbers<[1], [0], [0], [1], [0, 0, 1, 1], [], []>} : vector<10x128xbf16>, vector<128x128xbf16>, vector<10x128xf32> -> vector<10x128xf32>
    %c0_11 = arith.constant 0 : index
    %c0_12 = arith.constant 0 : index
    %33 = vector.load %arg5[%c0_11, %c0_12] : memref<1x128xf32, #tpu.memory_space<vmem>>, vector<1x128xf32>
    %34 = vector.broadcast %33 : vector<1x128xf32> to vector<10x128xf32>
    %35 = arith.addf %32, %34 : vector<10x128xf32>
    %36 = vector.extract_strided_slice %35 {offsets = [0, 0], sizes = [10, 2], strides = [1, 1]} : vector<10x128xf32> to vector<10x2xf32>
    %c0_13 = arith.constant 0 : index
    %c0_14 = arith.constant 0 : index
    %37 = vector.load %arg6[%c0_13, %c0_14] : memref<10x2xf32, #tpu.memory_space<vmem>>, vector<10x2xf32>
    tpu.vector_store %arg6[%c0_13, %c0_14], %36 {strides = array<i32>} : memref<10x2xf32, #tpu.memory_space<vmem>>, vector<10x2xf32>,
    return
  }
  func.func @transform_0(%arg0: i32) -> (i32, i32) {
    %c0_i32 = arith.constant 0 : i32
    %c0_i32_0 = arith.constant 0 : i32
    return %arg0, %c0_i32 : i32, i32
  }
  func.func @transform_1(%arg0: i32) -> (i32, i32) {
    %c0_i32 = arith.constant 0 : i32
    %c0_i32_0 = arith.constant 0 : i32
    %c0_i32_1 = arith.constant 0 : i32
    return %c0_i32, %c0_i32_0 : i32, i32
  }
  func.func @transform_2(%arg0: i32) -> (i32, i32) {
    %c0_i32 = arith.constant 0 : i32
    %c0_i32_0 = arith.constant 0 : i32
    %c0_i32_1 = arith.constant 0 : i32
    return %c0_i32, %c0_i32_0 : i32, i32
  }
  func.func @transform_3(%arg0: i32) -> (i32, i32) {
    %c0_i32 = arith.constant 0 : i32
    %c0_i32_0 = arith.constant 0 : i32
    %c0_i32_1 = arith.constant 0 : i32
    return %c0_i32, %c0_i32_0 : i32, i32
  }
  func.func @transform_4(%arg0: i32) -> (i32, i32) {
    %c0_i32 = arith.constant 0 : i32
    %c0_i32_0 = arith.constant 0 : i32
    %c0_i32_1 = arith.constant 0 : i32
    return %c0_i32, %c0_i32_0 : i32, i32
  }
  func.func @transform_5(%arg0: i32) -> (i32, i32) {
    %c0_i32 = arith.constant 0 : i32
    %c0_i32_0 = arith.constant 0 : i32
    return %arg0, %c0_i32 : i32, i32
  }
}

</mosaic_0001>

<llo_original>
// kernel: pgn_forward.1
$region0: #{pgn_forward.1}
  #allocation0 [shape = 'u32[]', space=smem, size = 0x4, offset = 0x4, fixed_abs, tag = 'smem constant byte address 0x4 - core index']
  #allocation1 [shape = 'u32[72,128]{1,0:T(1,128)}', space=vmem, size = 0x9000, scoped, tag = 'internal scratch']
  %s0 = inlined_call_operand.vmem [shape: f32[10,4], index: 0, kind: input, shape index: {}]
  %s1 = inlined_call_operand.vmem [shape: f32[4,128], index: 1, kind: input, shape index: {}]
  %s2 = inlined_call_operand.vmem [shape: f32[1,128], index: 2, kind: input, shape index: {}]
  %s3 = inlined_call_operand.hbm [shape: bf16[128,128], index: 3, kind: input, shape index: {}]
  %s4 = inlined_call_operand.vmem [shape: f32[1,128], index: 4, kind: input, shape index: {}]
  %s5 = inlined_call_operand.vmem [shape: f32[10,2], index: 5, kind: output, shape index: {}]
  %s6 = sld [smem:[#allocation0]]
  $region34: #{pgn_forward.1} parent=0
    _
  %s8 = ssub.s32 1, %s6
  %s9 = scalar_select 0, %s8, %s6
  $region1: #{pgn_forward.1} parent=0
    #allocation2 [shape = 'u8[32768]{0}', space=vmem, size = 0x8000, scoped, tag = 'input window, operand 3, single buffered']
    #allocation3 [shape = 's32[1]{0}', space=sflag, size = 0x4, scoped, tag = 'scoped memory for pgn_forward.1']
    %10 = vsyncpa [#allocation3], 0
    // Predicated region
    $region2: #{pgn_forward.1} parent=1 // pred_check
      _
    $region3: #{pgn_forward.1} parent=1 // pred_check_branch
      %12 = sbr.rel (0) target = $region5
    $region4: #{pgn_forward.1} parent=1 // pred_region
      _
    $region5: #{pgn_forward.1} parent=1 // pred_fallthru
      _
    // Predicated region
    $region6: #{pgn_forward.1} parent=1 // pred_check
      _
    $region7: #{pgn_forward.1} parent=1 // pred_check_branch
      %14 = sbr.rel (0) target = $region9
    $region8: #{pgn_forward.1} parent=1 // pred_region
      _
    $region9: #{pgn_forward.1} parent=1 // pred_fallthru
      _
    // Predicated region
    $region10: #{pgn_forward.1} parent=1 // pred_check
      _
    $region11: #{pgn_forward.1} parent=1 // pred_check_branch
      %16 = sbr.rel (0) target = $region13
    $region12: #{pgn_forward.1} parent=1 // pred_region
      _
    $region13: #{pgn_forward.1} parent=1 // pred_fallthru
      _
    // Predicated region
    $region14: #{pgn_forward.1} parent=1 // pred_check
      _
    $region15: #{pgn_forward.1} parent=1 // pred_check_branch
      %18 = sbr.rel (0) target = $region17
    $region16: #{pgn_forward.1} parent=1 // pred_region
      %20 = vsyncadd [#allocation3], 0
      %s21 = sshll.u32 %s3, 4
      %s22 = int_to_ptr.hbm [resolvable:$true] %s21
      %s23 = sshll.u32 [#allocation2], 4
      %s24 = int_to_ptr.vmem [resolvable:$true] %s23
      %29 = dma.hbm_to_vmem [thread:$0]  %s22, 1024, %s24, [#allocation3], 64, 64, 4
    $region17: #{pgn_forward.1} parent=1 // pred_fallthru
      _
    // Predicated region
    $region18: #{pgn_forward.1} parent=1 // pred_check
      _
    $region19: #{pgn_forward.1} parent=1 // pred_check_branch
      %31 = sbr.rel (0) target = $region21
    $region20: #{pgn_forward.1} parent=1 // pred_region
      _
    $region21: #{pgn_forward.1} parent=1 // pred_fallthru
      _
    // Predicated region
    $region22: #{pgn_forward.1} parent=1 // pred_check
      _
    $region23: #{pgn_forward.1} parent=1 // pred_check_branch
      %33 = sbr.rel (0) target = $region25
    $region24: #{pgn_forward.1} parent=1 // pred_region
      %35 = dma.done [#allocation3], 1024
    $region25: #{pgn_forward.1} parent=1 // pred_fallthru
      _
    %v36 = vld [vmem:[%s0] sm:$0xff]
    %v37 = vld [vmem:[%s0 + $0x8] sm:$0x3]
    %v38 = vld [vmem:[%s2] sm:$0x1]
    %v40 = vperm.slane %v38, 0
    %v42 = vld [vmem:[%s1] sm:$0x1]
    %44 = vset.pattern.permute.xlu0 0
    %45 = vperm.xlu0 %44, %v36
    %v46 = vpop.permute.xlu0 %45
    %49 = vset.pattern.permute.xlu0 0
    %50 = vperm.xlu0 %49, %v37
    %v51 = vpop.permute.xlu0 %50
    %v53 = vperm.slane %v42, 0
    %v54 = vmul.f32 %v46, %v53
    %v55 = vmul.f32 %v51, %v53
    %v56 = vadd.f32 %v40, %v54
    %v57 = vadd.f32 %v40, %v55
    %v58 = vld [vmem:[%s1 + $0x1] sm:$0x1]
    %59 = vset.pattern.permute.xlu0 1
    %60 = vperm.xlu0 %59, %v36
    %v61 = vpop.permute.xlu0 %60
    %63 = vset.pattern.permute.xlu0 1
    %64 = vperm.xlu0 %63, %v37
    %v65 = vpop.permute.xlu0 %64
    %v67 = vperm.slane %v58, 0
    %v68 = vmul.f32 %v61, %v67
    %v69 = vmul.f32 %v65, %v67
    %v70 = vadd.f32 %v56, %v68
    %v71 = vadd.f32 %v57, %v69
    %v72 = vld [vmem:[%s1 + $0x2] sm:$0x1]
    %73 = vset.pattern.permute.xlu0 2
    %74 = vperm.xlu0 %73, %v36
    %v75 = vpop.permute.xlu0 %74
    %77 = vset.pattern.permute.xlu0 2
    %78 = vperm.xlu0 %77, %v37
    %v79 = vpop.permute.xlu0 %78
    %v81 = vperm.slane %v72, 0
    %v82 = vmul.f32 %v75, %v81
    %v83 = vmul.f32 %v79, %v81
    %v84 = vadd.f32 %v70, %v82
    %v85 = vadd.f32 %v71, %v83
    %v86 = vld [vmem:[%s1 + $0x3] sm:$0x1]
    %87 = vset.pattern.permute.xlu0 3
    %88 = vperm.xlu0 %87, %v36
    %v89 = vpop.permute.xlu0 %88
    %91 = vset.pattern.permute.xlu0 3
    %92 = vperm.xlu0 %91, %v37
    %v93 = vpop.permute.xlu0 %92
    %v95 = vperm.slane %v86, 0
    %v96 = vmul.f32 %v89, %v95
    %v97 = vmul.f32 %v93, %v95
    %v98 = vadd.f32 %v84, %v96
    %v99 = vadd.f32 %v85, %v97
    %v100 = vmax.f32 %v98, 0.0
    %v101 = vmax.f32 %v99, 0.0
    %v102 = vpack.c.bf16 %v101, %v100
    %v103 = vld [vmem:[#allocation2] sm:$0xf]
    %v104 = vld [vmem:[#allocation2 + $0x4] sm:$0xf]
    %v105 = vld [vmem:[#allocation2 + $0x8] sm:$0xf]
    %v106 = vld [vmem:[#allocation2 + $0xc] sm:$0xf]
    %v107 = vld [vmem:[#allocation2 + $0x10] sm:$0xf]
    %v108 = vld [vmem:[#allocation2 + $0x14] sm:$0xf]
    %v109 = vld [vmem:[#allocation2 + $0x18] sm:$0xf]
    %v110 = vld [vmem:[#allocation2 + $0x1c] sm:$0xf]
    %v111 = vld [vmem:[#allocation2 + $0x20] sm:$0xf]
    %v112 = vld [vmem:[#allocation2 + $0x24] sm:$0xf]
    %v113 = vld [vmem:[#allocation2 + $0x28] sm:$0xf]
    %v114 = vld [vmem:[#allocation2 + $0x2c] sm:$0xf]
    %v115 = vld [vmem:[#allocation2 + $0x30] sm:$0xf]
    %v116 = vld [vmem:[#allocation2 + $0x34] sm:$0xf]
    %v117 = vld [vmem:[#allocation2 + $0x38] sm:$0xf]
    %v118 = vld [vmem:[#allocation2 + $0x3c] sm:$0xf]
    %v119 = vld [vmem:[%s4] sm:$0x1]
    %v121 = vperm.slane %v119, 0
    %v139 = vunpack.c.l.b16 %v103
    %v140 = vunpack.c.l.b16 %v104
    %v141 = vunpack.c.l.b16 %v105
    %v142 = vunpack.c.l.b16 %v106
    %v143 = vunpack.c.l.b16 %v107
    %v144 = vunpack.c.l.b16 %v108
    %v145 = vunpack.c.l.b16 %v109
    %v146 = vunpack.c.l.b16 %v110
    %v147 = vunpack.c.l.b16 %v111
    %v148 = vunpack.c.l.b16 %v112
    %v149 = vunpack.c.l.b16 %v113
    %v150 = vunpack.c.l.b16 %v114
    %v151 = vunpack.c.l.b16 %v115
    %v152 = vunpack.c.l.b16 %v116
    %v153 = vunpack.c.l.b16 %v117
    %v154 = vunpack.c.l.b16 %v118
    %v155 = vpack.c.b16 %v140, %v139
    %v156 = vpack.c.b16 %v142, %v141
    %v157 = vpack.c.b16 %v144, %v143
    %v158 = vpack.c.b16 %v146, %v145
    %v159 = vpack.c.b16 %v148, %v147
    %v160 = vpack.c.b16 %v150, %v149
    %v161 = vpack.c.b16 %v152, %v151
    %v162 = vpack.c.b16 %v154, %v153
    %171 = vmatpush.bf16.msra.mxu0 %v162
    %172 = vmatpush.bf16.msra.mxu0 %v161
    %173 = vmatpush.bf16.msra.mxu0 %v160
    %174 = vmatpush.bf16.msra.mxu0 %v159
    %175 = vmatpush.bf16.msra.mxu0 %v158
    %176 = vmatpush.bf16.msra.mxu0 %v157
    %177 = vmatpush.bf16.msra.mxu0 %v156
    %178 = vmatpush.bf16.msra.mxu0 %v155
    %179 = vmatmul.bf16.gmra.mxu0 %v102
    %v180 = vpop.f32.mrf.mxu0
    %v181 = vadd.f32 %v121, %v180
    %v182 = vpop.f32.mrf.mxu0
    %v183 = vadd.f32 %v121, %v182
    %184 = vdwg.mxu0
    %vm185 = vcmask 15360
    %186 = vst.msk [vmem:[%s5] sm:$0xff] %vm185, %v181
    %vm187 = vcmask 9216
    %188 = vst.msk [vmem:[%s5 + $0x8] sm:$0x3] %vm187, %v183
    // Predicated region
    $region26: #{pgn_forward.1} parent=1 // pred_check
      _
    $region27: #{pgn_forward.1} parent=1 // pred_check_branch
      %190 = sbr.rel (0) target = $region29
    $region28: #{pgn_forward.1} parent=1 // pred_region
      _
    $region29: #{pgn_forward.1} parent=1 // pred_fallthru
      _
    // Predicated region
    $region30: #{pgn_forward.1} parent=1 // pred_check
      _
    $region31: #{pgn_forward.1} parent=1 // pred_check_branch
      %192 = sbr.rel (0) target = $region33
    $region32: #{pgn_forward.1} parent=1 // pred_region
      _
    $region33: #{pgn_forward.1} parent=1 // pred_fallthru
      _
    %193 = vsyncpa [#allocation3], 1

</llo_original>
